<compile_context>
chip_gen: v7x
topology: tpu7x:2x2x1
jax: 0.10.0
libtpu: 0.0.40
codegen_flags: <defaults>
</compile_context>

<pallas_src>
import jax
import jax.numpy as jnp
from jax.experimental import pallas as pl
from jax.experimental.pallas import tpu as pltpu


def _round_up(x, m):
    return ((x + m - 1) // m) * m


def _pick_tile(dim, target, unit):
    """Largest multiple of `unit` that divides `dim` and is <= target; else full dim."""
    best = None
    t = unit
    lim = min(dim, target)
    while t <= lim:
        if dim % t == 0:
            best = t
        t += unit
    return best if best is not None else dim  # full dim is always a legal block size


def _spmamm_kernel(a_ref, x_ref, o_ref, acc_ref):
    # a_ref: (1, tm, tk)   A tile (rows i, contracted j)
    # x_ref: (1, tk, tK)   X tile (contracted j, lane-flattened (k, d))
    # o_ref: (1, tm, tK)   output tile
    # acc_ref: (tm, tK) f32 accumulator, resident across the reduction axis.
    @pl.when(pl.program_id(3) == 0)
    def _init():
        acc_ref[...] = jnp.zeros_like(acc_ref)

    acc_ref[...] += jnp.dot(a_ref[0], x_ref[0], preferred_element_type=jnp.float32)

    @pl.when(pl.program_id(3) == pl.num_programs(3) - 1)
    def _store():
        o_ref[0] = acc_ref[...].astype(o_ref.dtype)


def _spmamm_matmul(a_dense, xf_flat):
    """Batched contraction: out[b, i, K] = sum_j a_dense[b, i, j] * xf_flat[b, j, K]."""
    b, M, J = a_dense.shape
    _, J2, K = xf_flat.shape
    assert J == J2

    M_pad = _round_up(M, 8)      # sublane minimum (f32)
    J_pad = _round_up(J, 8)
    K_pad = _round_up(K, 128)    # lane-dense output

    a_p = jnp.pad(a_dense, ((0, 0), (0, M_pad - M), (0, J_pad - J)))
    x_p = jnp.pad(xf_flat, ((0, 0), (0, J_pad - J), (0, K_pad - K)))

    tm = _pick_tile(M_pad, 256, 8)     # rows per step
    tK = _pick_tile(K_pad, 512, 128)   # lanes per step
    tk = _pick_tile(J_pad, 512, 128)   # contraction tile (falls back to full J_pad)

    grid = (b, M_pad // tm, K_pad // tK, J_pad // tk)

    out = pl.pallas_call(
        _spmamm_kernel,
        out_shape=jax.ShapeDtypeStruct((b, M_pad, K_pad), xf_flat.dtype),
        grid_spec=pltpu.PrefetchScalarGridSpec(
            num_scalar_prefetch=0,
            grid=grid,
            in_specs=[
                pl.BlockSpec((1, tm, tk), lambda bi, mi, ki, ji: (bi, mi, ji)),
                pl.BlockSpec((1, tk, tK), lambda bi, mi, ki, ji: (bi, ji, ki)),
            ],
            out_specs=pl.BlockSpec((1, tm, tK), lambda bi, mi, ki, ji: (bi, mi, ki)),
            scratch_shapes=[pltpu.VMEM((tm, tK), jnp.float32)],
        ),
        compiler_params=pltpu.CompilerParams(
            dimension_semantics=("parallel", "parallel", "parallel", "arbitrary")),
    )(a_p, x_p)

    return out[:, :M, :K]


def op_sp_message_passing(a_indices, a_values, x_data, x_mask, tar_mask,
                          *, dim1=2, dim2=1, aggr="sum"):
    """Pallas implementation of OpSpMessagePassing.forward (spmamm)."""
    b, n, n2, d = x_data.shape
    assert n == n2, "X should be b x n x n 2d representations"
    assert x_mask.shape == (b, n, n)
    assert tar_mask.shape == (b, n, n)
    assert dim1 in (1, 2) and dim2 in (1, 2)
    if aggr == "mean":
        raise NotImplementedError("mean aggregation not implemented (matches pygho)")
    if aggr != "sum":
        # TODO(synk): 'max' aggregation needs a masked-max reduction kernel (-inf fill).
        raise NotImplementedError(f"aggr={aggr!r} not implemented")

    dtype = x_data.dtype

    # Densify the sparse adjacency (glue; the heavy contraction runs in Pallas).
    if a_values is None:
        a_values = jnp.ones((a_indices.shape[1],), dtype=dtype)
    a_dense = jnp.zeros((b, n, n), dtype=dtype).at[
        a_indices[0], a_indices[1], a_indices[2]].add(a_values.astype(dtype))

    # Bring contracted dims into canonical position:
    #   A' : (b, i_out, j_contracted),  X' : (b, j_contracted, k_out, d)
    if dim1 == 1:
        a_dense = jnp.swapaxes(a_dense, 1, 2)
    if dim2 == 2:
        x_data = jnp.swapaxes(x_data, 1, 2)
        x_mask = jnp.swapaxes(x_mask, 1, 2)

    # fill_masked(0) for sum aggregation, then flatten (k_out, d) into one lane axis.
    xf = jnp.where(x_mask[..., None], x_data, jnp.zeros((), dtype))
    xf_flat = xf.reshape(b, n, n * d)

    out_flat = _spmamm_matmul(a_dense, xf_flat)
    out_data = out_flat.reshape(b, n, n, d)

    # Returned MaskedTensor = (data, tarX.mask); masked-out entries are unspecified,
    # same as pygho (it does not zero them either).
    return out_data, tar_mask


if __name__ == "__main__":
    key = jax.random.PRNGKey(0)
    k_adj, k_w, k_x, k_xm, k_tm = jax.random.split(key, 5)

    b, n, d = 2, 16, 32
    dim1, dim2, aggr = 2, 1, "sum"

    # Sparse adjacency A as COO indices (3, nnz) + edge weights (nnz,).
    adj = jax.random.bernoulli(k_adj, 0.3, (b, n, n))
    weights_dense = jax.random.normal(k_w, (b, n, n), dtype=jnp.float32)
    bi, ii, jj = jnp.nonzero(adj)
    a_indices = jnp.stack([bi, ii, jj]).astype(jnp.int32)
    a_values = weights_dense[bi, ii, jj]

    # Masked 2D-tuple representation X and target mask.
    x_data = jax.random.normal(k_x, (b, n, n, d), dtype=jnp.float32)
    x_mask = jax.random.bernoulli(k_xm, 0.8, (b, n, n))
    tar_mask = jax.random.bernoulli(k_tm, 0.8, (b, n, n))

    out_data, out_mask = op_sp_message_passing(
        a_indices, a_values, x_data, x_mask, tar_mask,
        dim1=dim1, dim2=dim2, aggr=aggr)
    jax.block_until_ready(out_data)
    jax.block_until_ready(out_mask)

    # Reference (plain JAX): densify A, zero-fill masked X entries, contract j.
    a_dense_ref = jnp.zeros((b, n, n), jnp.float32).at[
        a_indices[0], a_indices[1], a_indices[2]].add(a_values)
    xf_ref = jnp.where(x_mask[..., None], x_data, 0.0)
    ref = jnp.einsum("bij,bjkd->bikd", a_dense_ref, xf_ref)

    assert out_data.shape == (b, n, n, d)
    assert out_mask.shape == (b, n, n)
    assert jnp.array_equal(out_mask, tar_mask)
    assert jnp.allclose(out_data, ref, rtol=2e-2, atol=2e-2), float(
        jnp.max(jnp.abs(out_data - ref)))

    print("KERNEL_OK")
</pallas_src>

<mosaic_0001>
module attributes {stable_mosaic.version = 11 : i64} {
  func.func @_spmamm_kernel(%arg0: i32, %arg1: i32, %arg2: i32, %arg3: i32, %arg4: memref<1x16x16xf32, #tpu.memory_space<vmem>>, %arg5: memref<1x16x512xf32, #tpu.memory_space<vmem>>, %arg6: memref<1x16x512xf32, #tpu.memory_space<vmem>>, %arg7: memref<16x512xf32, #tpu.memory_space<vmem>>) attributes {dimension_semantics = [#tpu.dimension_semantics<parallel>, #tpu.dimension_semantics<parallel>, #tpu.dimension_semantics<parallel>, #tpu.dimension_semantics<arbitrary>], iteration_bounds = array<i64: 2, 1, 1, 1>, scalar_prefetch = 0 : i64, scratch_operands = 1 : i64, tpu.core_type = #tpu.core_type<tc>, window_params = [{transform_indices = @transform_0, window_bounds = array<i64: 1, 16, 16>}, {transform_indices = @transform_1, window_bounds = array<i64: 1, 16, 512>}, {transform_indices = @transform_2, window_bounds = array<i64: 1, 16, 512>}]} {
    %c0_i32 = arith.constant 0 : i32
    %0 = arith.cmpi eq, %arg3, %c0_i32 : i32
    %1 = arith.extui %0 : i1 to i32
    %c0_i32_0 = arith.constant 0 : i32
    %2 = arith.cmpi ne, %1, %c0_i32_0 : i32
    scf.if %2 {
      %cst_12 = arith.constant 0.000000e+00 : f32
      %14 = vector.broadcast %cst_12 : f32 to vector<16x512xf32>
      %c0_13 = arith.constant 0 : index
      %c0_14 = arith.constant 0 : index
      %15 = vector.load %arg7[%c0_13, %c0_14] : memref<16x512xf32, #tpu.memory_space<vmem>>, vector<16x512xf32>
      tpu.vector_store %arg7[%c0_13, %c0_14], %14 {strides = array<i32>} : memref<16x512xf32, #tpu.memory_space<vmem>>, vector<16x512xf32>,
    } else {
    }
    %c0 = arith.constant 0 : index
    %c0_1 = arith.constant 0 : index
    %3 = vector.load %arg7[%c0, %c0_1] : memref<16x512xf32, #tpu.memory_space<vmem>>, vector<16x512xf32>
    %c0_2 = arith.constant 0 : index
    %c0_3 = arith.constant 0 : index
    %c0_4 = arith.constant 0 : index
    %4 = vector.load %arg4[%c0_2, %c0_3, %c0_4] : memref<1x16x16xf32, #tpu.memory_space<vmem>>, vector<1x16x16xf32>
    %5 = vector.shape_cast %4 : vector<1x16x16xf32> to vector<16x16xf32>
    %c0_5 = arith.constant 0 : index
    %c0_6 = arith.constant 0 : index
    %c0_7 = arith.constant 0 : index
    %6 = vector.load %arg5[%c0_5, %c0_6, %c0_7] : memref<1x16x512xf32, #tpu.memory_space<vmem>>, vector<1x16x512xf32>
    %7 = vector.shape_cast %6 : vector<1x16x512xf32> to vector<16x512xf32>
    %cst = arith.constant dense<0.000000e+00> : vector<16x512xf32>
    %8 = tpu.matmul %5, %7, %cst {dimension_numbers = #tpu.dot_dimension_numbers<[1], [0], [0], [1], [0, 0, 1, 1], [], []>} : vector<16x16xf32>, vector<16x512xf32>, vector<16x512xf32> -> vector<16x512xf32>
    %9 = arith.addf %3, %8 : vector<16x512xf32>
    %c0_8 = arith.constant 0 : index
    %c0_9 = arith.constant 0 : index
    %10 = vector.load %arg7[%c0_8, %c0_9] : memref<16x512xf32, #tpu.memory_space<vmem>>, vector<16x512xf32>
    tpu.vector_store %arg7[%c0_8, %c0_9], %9 {strides = array<i32>} : memref<16x512xf32, #tpu.memory_space<vmem>>, vector<16x512xf32>,
    %c0_i32_10 = arith.constant 0 : i32
    %11 = arith.cmpi eq, %arg3, %c0_i32_10 : i32
    %12 = arith.extui %11 : i1 to i32
    %c0_i32_11 = arith.constant 0 : i32
    %13 = arith.cmpi ne, %12, %c0_i32_11 : i32
    scf.if %13 {
      %c0_12 = arith.constant 0 : index
      %c0_13 = arith.constant 0 : index
      %14 = vector.load %arg7[%c0_12, %c0_13] : memref<16x512xf32, #tpu.memory_space<vmem>>, vector<16x512xf32>
      %c0_14 = arith.constant 0 : index
      %c0_15 = arith.constant 0 : index
      %c0_16 = arith.constant 0 : index
      %15 = vector.load %arg6[%c0_14, %c0_15, %c0_16] : memref<1x16x512xf32, #tpu.memory_space<vmem>>, vector<1x16x512xf32>
      %16 = vector.shape_cast %15 : vector<1x16x512xf32> to vector<16x512xf32>
      %17 = vector.shape_cast %14 : vector<16x512xf32> to vector<1x16x512xf32>
      tpu.vector_store %arg6[%c0_14, %c0_15, %c0_16], %17 {strides = array<i32>} : memref<1x16x512xf32, #tpu.memory_space<vmem>>, vector<1x16x512xf32>,
    } else {
    }
    return
  }
  func.func @transform_0(%arg0: i32, %arg1: i32, %arg2: i32, %arg3: i32) -> (i32, i32, i32) {
    %c0_i32 = arith.constant 0 : i32
    return %arg0, %arg1, %arg3 : i32, i32, i32
  }
  func.func @transform_1(%arg0: i32, %arg1: i32, %arg2: i32, %arg3: i32) -> (i32, i32, i32) {
    %c0_i32 = arith.constant 0 : i32
    return %arg0, %arg3, %arg2 : i32, i32, i32
  }
  func.func @transform_2(%arg0: i32, %arg1: i32, %arg2: i32, %arg3: i32) -> (i32, i32, i32) {
    %c0_i32 = arith.constant 0 : i32
    return %arg0, %arg1, %arg2 : i32, i32, i32
  }
}

</mosaic_0001>

<llo_original>
// kernel: tpu_custom_call.1
$region0: #{tpu_custom_call.1}
  #allocation0 [shape = 'u32[]', space=smem, size = 0x4, offset = 0x4, fixed_abs, tag = 'smem constant byte address 0x4 - core index']
  #allocation1 [shape = 'u32[144,128]{1,0:T(1,128)}', space=vmem, size = 0x12000, scoped, tag = 'internal scratch']
  #allocation2 [shape = 'f32[16,512]{1,0:T(8,128)}', space=vmem, size = 0x8000, scoped, tag = 'scratch operand']
  %s0 = inlined_call_operand.hbm [shape: f32[2,16,16], index: 0, kind: input, shape index: {}]
  %s1 = inlined_call_operand.hbm [shape: f32[2,16,512], index: 1, kind: input, shape index: {}]
  %s2 = inlined_call_operand.hbm [shape: f32[2,16,512], index: 2, kind: output, shape index: {}]
  %s3 = sld [smem:[#allocation0]]
  $region57: #{tpu_custom_call.1} parent=0
    _
  %s5 = ssub.s32 1, %s3
  %s6 = scalar_select 0, %s5, %s3
  $region1: #{tpu_custom_call.1} parent=0
    #allocation3 [shape = 'u8[16384]{0}', space=vmem, size = 0x4000, scoped, tag = 'input window, operand 0']
    #allocation4 [shape = 's32[2]{0}', space=sflag, size = 0x8, scoped, tag = 'scoped memory for tpu_custom_call.1']
    #allocation5 [shape = 's32[2]{0}', space=sflag, size = 0x8, scoped, tag = 'scoped memory for tpu_custom_call.1']
    #allocation6 [shape = 'u8[65536]{0}', space=vmem, size = 0x10000, scoped, tag = 'input window, operand 1']
    #allocation7 [shape = 's32[2]{0}', space=sflag, size = 0x8, scoped, tag = 'scoped memory for tpu_custom_call.1']
    #allocation8 [shape = 'u8[65536]{0}', space=vmem, size = 0x10000, scoped, tag = 'output window, operand 0']
    %7 = vsyncpa [#allocation4], 0
    %s8 = scalar_lea.sflag [#allocation4], 1
    %9 = vsyncpa %s8, 0
    %10 = vsyncpa [#allocation7], 0
    %s11 = scalar_lea.sflag [#allocation7], 1
    %12 = vsyncpa %s11, 0
    %13 = vsyncpa [#allocation5], 0
    %s14 = scalar_lea.sflag [#allocation5], 1
    %15 = vsyncpa %s14, 0
    loop: start=0, step=1, limit=4
    $region2: #{tpu_custom_call.1} parent=1 // loop_pre_header
      _
    $region3: #{tpu_custom_call.1} parent=1 // loop_header
      %s17 = sphi 0, %s21
      %p18 = scmp.ge.s32.totalorder %s17, 4
      %s24 = sphi 0, %s50
      %s25 = sphi 0, %s46
      %s26 = sphi 0, %s42
      %s27 = sphi 0, %s38
      %s28 = sphi 0, %s24
      %s29 = sphi 0, %s25
      %s30 = sphi 0, %s26
      %s31 = sphi 0, %s27
      %s32 = sphi 0, %s28
      %s33 = sphi 0, %s29
      %s34 = sphi 0, %s30
      %s35 = sphi 0, %s31
      %s57 = sphi 0, %s59
      %s60 = sphi 0, %s57
      %s61 = sphi 0, %s60
      %s77 = sphi 0, %s61
      %s87 = sphi 0, %s89
      %s90 = sphi 0, %s87
      %s91 = sphi 0, %s90
      %s107 = sphi 0, %s91
      %s117 = sphi 0, %s119
      %s120 = sphi 0, %s117
      %s121 = sphi 0, %s120
      %s137 = sphi 0, %s121
    $region4: #{tpu_custom_call.1} parent=1 // loop_header_branch
      %20 = sbr.rel (%p18) target = $region8
    $region5: #{tpu_custom_call.1} parent=1 // loop_body
      %s22 = ssub.s32 %s17, 1
      %s23 = ssub.s32 %s17, 2
      %s36 = sadd.s32 1, %s27
      %p37 = scmp.ge.s32.totalorder %s36, 1
      %s38 = scalar_select %p37, 0, %s36
      %s39 = sadd.s32 1, %s26
      %s40 = scalar_select %p37, %s39, %s26
      %p41 = scmp.ge.s32.totalorder %s40, 1
      %s42 = scalar_select %p41, 0, %s40
      %s43 = sadd.s32 1, %s25
      %s44 = scalar_select %p41, %s43, %s25
      %p45 = scmp.ge.s32.totalorder %s44, 1
      %s46 = scalar_select %p45, 0, %s44
      %s47 = sadd.s32 1, %s24
      %s48 = scalar_select %p45, %s47, %s24
      %p49 = scmp.ge.s32.totalorder %s48, 2
      %s50 = scalar_select %p49, 0, %s48
      %s51 = ssub.s32 %s24, %s50
      %s52 = ssub.s32 %s25, %s46
      %s53 = sor.u32 %s51, %s52
      %s54 = ssub.s32 %s27, %s38
      %s55 = sor.u32 %s53, %s54
      %p56 = scmp.eq.s32.totalorder %s55, 0
      %s58 = sadd.s32 %s57, 1
      %s59 = scalar_select %p56, %s57, %s58
      %p62 = pneg %p56
      %p63 = scmp.eq.s32.totalorder %s17, 1
      %p64 = por %p62, %p63
      %p65 = scmp.ne.s32.totalorder %s57, %s60
      %p66 = scmp.eq.s32.totalorder %s17, 0
      %p67 = por %p65, %p66
      %p68 = scmp.ne.s32.totalorder %s57, %s60
      %p69 = scmp.eq.s32.totalorder %s22, 1
      %p70 = por %p68, %p69
      %p71 = scmp.ne.s32.totalorder %s60, %s61
      %p72 = scmp.eq.s32.totalorder %s22, 0
      %p73 = por %p71, %p72
      %p74 = scmp.ne.s32.totalorder %s60, %s61
      %p75 = scmp.eq.s32.totalorder %s23, 1
      %p76 = por %p74, %p75
      %p78 = scmp.ne.s32.totalorder %s61, %s77
      %p79 = scmp.eq.s32.totalorder %s23, 0
      %p80 = por %p78, %p79
      %s81 = ssub.s32 %s24, %s50
      %s82 = ssub.s32 %s27, %s38
      %s83 = sor.u32 %s81, %s82
      %s84 = ssub.s32 %s26, %s42
      %s85 = sor.u32 %s83, %s84
      %p86 = scmp.eq.s32.totalorder %s85, 0
      %s88 = sadd.s32 %s87, 1
      %s89 = scalar_select %p86, %s87, %s88
      %p92 = pneg %p86
      %p93 = scmp.eq.s32.totalorder %s17, 1
      %p94 = por %p92, %p93
      %p95 = scmp.ne.s32.totalorder %s87, %s90
      %p96 = scmp.eq.s32.totalorder %s17, 0
      %p97 = por %p95, %p96
      %p98 = scmp.ne.s32.totalorder %s87, %s90
      %p99 = scmp.eq.s32.totalorder %s22, 1
      %p100 = por %p98, %p99
      %p101 = scmp.ne.s32.totalorder %s90, %s91
      %p102 = scmp.eq.s32.totalorder %s22, 0
      %p103 = por %p101, %p102
      %p104 = scmp.ne.s32.totalorder %s90, %s91
      %p105 = scmp.eq.s32.totalorder %s23, 1
      %p106 = por %p104, %p105
      %p108 = scmp.ne.s32.totalorder %s91, %s107
      %p109 = scmp.eq.s32.totalorder %s23, 0
      %p110 = por %p108, %p109
      %s111 = ssub.s32 %s24, %s50
      %s112 = ssub.s32 %s25, %s46
      %s113 = sor.u32 %s111, %s112
      %s114 = ssub.s32 %s26, %s42
      %s115 = sor.u32 %s113, %s114
      %p116 = scmp.eq.s32.totalorder %s115, 0
      %s118 = sadd.s32 %s117, 1
      %s119 = scalar_select %p116, %s117, %s118
      %p122 = pneg %p116
      %p123 = scmp.eq.s32.totalorder %s17, 1
      %p124 = por %p122, %p123
      %p125 = scmp.ne.s32.totalorder %s117, %s120
      %p126 = scmp.eq.s32.totalorder %s17, 0
      %p127 = por %p125, %p126
      %p128 = scmp.ne.s32.totalorder %s117, %s120
      %p129 = scmp.eq.s32.totalorder %s22, 1
      %p130 = por %p128, %p129
      %p131 = scmp.ne.s32.totalorder %s120, %s121
      %p132 = scmp.eq.s32.totalorder %s22, 0
      %p133 = por %p131, %p132
      %p134 = scmp.ne.s32.totalorder %s120, %s121
      %p135 = scmp.eq.s32.totalorder %s23, 1
      %p136 = por %p134, %p135
      %p138 = scmp.ne.s32.totalorder %s121, %s137
      %p139 = scmp.eq.s32.totalorder %s23, 0
      %p140 = por %p138, %p139
      %p141 = scmp.le.s32.totalorder 1, %s17
      %p142 = scmp.lt.s32.totalorder %s17, 3
      %p143 = pnand %p141, %p142
      %p144 = pneg %p143
      // Predicated region
      $region9: #{tpu_custom_call.1} parent=5 // pred_check
        _
      $region10: #{tpu_custom_call.1} parent=5 // pred_check_branch
        %146 = sbr.rel (%p143) target = $region12
      $region11: #{tpu_custom_call.1} parent=5 // pred_region
        %s147 = ssub.s32 %s17, 1
      $region12: #{tpu_custom_call.1} parent=5 // pred_fallthru
        _
      %p148 = scmp.lt.s32.totalorder %s17, 2
      // Predicated region
      $region13: #{tpu_custom_call.1} parent=5 // pred_check
        %p149 = pneg %p148
      $region14: #{tpu_custom_call.1} parent=5 // pred_check_branch
        %151 = sbr.rel (%p149) target = $region16
      $region15: #{tpu_custom_call.1} parent=5 // pred_region
        // Predicated region
        $region17: #{tpu_custom_call.1} parent=15 // pred_check
          %p152 = pneg %p67
        $region18: #{tpu_custom_call.1} parent=15 // pred_check_branch
          %154 = sbr.rel (%p152) target = $region20
        $region19: #{tpu_custom_call.1} parent=15 // pred_region
          %s155 = sand.u32 %s57, 1
          %s156 = scalar_lea.sflag [#allocation4], %s155
          %s157 = sand.u32 %s57, 1
          %s158 = smul.addr %s157, 16
          %s159 = scalar_lea.vmem [#allocation3], %s158
          %s160 = smul.u32 2, %s25
          %s162 = ssub.s32 256, 256
          %163 = vsyncadd %s156, %s162
          %s164 = sadd.s32 %s27, %s160
          %s165 = smul.addr %s24, 2
          %s166 = sadd.s32 %s164, %s165
          %s167 = smul.addr %s166, 128
          %s168 = scalar_lea.hbm %s0, %s167
          %s169 = sshll.u32 %s159, 4
          %s170 = int_to_ptr.vmem [resolvable:$true] %s169
          %175 = dma.hbm_to_vmem [thread:$0]  %s168, 256, %s170, %s156, 128, 128, 8
        $region20: #{tpu_custom_call.1} parent=15 // pred_fallthru
          _
        // Predicated region
        $region21: #{tpu_custom_call.1} parent=15 // pred_check
          %p176 = pneg %p97
        $region22: #{tpu_custom_call.1} parent=15 // pred_check_branch
          %178 = sbr.rel (%p176) target = $region24
        $region23: #{tpu_custom_call.1} parent=15 // pred_region
          %s179 = sand.u32 %s87, 1
          %s180 = scalar_lea.sflag [#allocation7], %s179
          %s181 = sand.u32 %s87, 1
          %s182 = smul.addr %s181, 64
          %s183 = scalar_lea.vmem [#allocation6], %s182
          %s184 = smul.u32 2, %s27
          %s185 = smul.u32 4, %s26
          %s187 = ssub.s32 1024, 1024
          %188 = vsyncadd %s180, %s187
          %s189 = smul.addr %s184, 4
          %s190 = sadd.s32 %s185, %s189
          %s191 = smul.addr %s24, 8
          %s192 = sadd.s32 %s190, %s191
          %s193 = smul.addr %s192, 128
          %s194 = scalar_lea.hbm %s1, %s193
          %s195 = sshll.u32 %s183, 4
          %s196 = int_to_ptr.vmem [resolvable:$true] %s195
          %201 = dma.hbm_to_vmem [thread:$0]  %s194, 1024, %s196, %s180, 512, 512, 32
        $region24: #{tpu_custom_call.1} parent=15 // pred_fallthru
          _
      $region16: #{tpu_custom_call.1} parent=5 // pred_fallthru
        _
      %p202 = scmp.le.s32.totalorder 1, %s17
      %p203 = scmp.lt.s32.totalorder %s17, 3
      %p204 = pnand %p202, %p203
      %p205 = pneg %p204
      // Predicated region
      $region25: #{tpu_custom_call.1} parent=5 // pred_check
        _
      $region26: #{tpu_custom_call.1} parent=5 // pred_check_branch
        %207 = sbr.rel (%p204) target = $region28
      $region27: #{tpu_custom_call.1} parent=5 // pred_region
        %s208 = ssub.s32 %s17, 1
        %s209 = sand.u32 %s60, 1
        %s210 = scalar_lea.sflag [#allocation4], %s209
        %s211 = sand.u32 %s60, 1
        %s212 = smul.addr %s211, 16
        %s213 = scalar_lea.vmem [#allocation3], %s212
        // Predicated region
        $region29: #{tpu_custom_call.1} parent=27 // pred_check
          %p214 = pneg %p73
        $region30: #{tpu_custom_call.1} parent=27 // pred_check_branch
          %216 = sbr.rel (%p214) target = $region32
        $region31: #{tpu_custom_call.1} parent=27 // pred_region
          %217 = dma.done %s210, 256
        $region32: #{tpu_custom_call.1} parent=27 // pred_fallthru
          _
        %s218 = sand.u32 %s90, 1
        %s219 = scalar_lea.sflag [#allocation7], %s218
        %s220 = sand.u32 %s90, 1
        %s221 = smul.addr %s220, 64
        %s222 = scalar_lea.vmem [#allocation6], %s221
        // Predicated region
        $region33: #{tpu_custom_call.1} parent=27 // pred_check
          %p223 = pneg %p103
        $region34: #{tpu_custom_call.1} parent=27 // pred_check_branch
          %225 = sbr.rel (%p223) target = $region36
        $region35: #{tpu_custom_call.1} parent=27 // pred_region
          %226 = dma.done %s219, 1024
        $region36: #{tpu_custom_call.1} parent=27 // pred_fallthru
          _
        %s227 = sand.u32 %s60, 1
        %s228 = scalar_lea.sflag [#allocation4], %s227
        %s229 = sand.u32 %s60, 1
        %s230 = smul.addr %s229, 16
        %s231 = scalar_lea.vmem [#allocation3], %s230
        %p232 = pneg %p73
        %p233 = pneg %p70
        %s234 = sand.u32 %s90, 1
        %s235 = scalar_lea.sflag [#allocation7], %s234
        %s236 = sand.u32 %s90, 1
        %s237 = smul.addr %s236, 64
        %s238 = scalar_lea.vmem [#allocation6], %s237
        %p239 = pneg %p103
        %p240 = pneg %p100
        %p241 = pneg %p133
        %p242 = pneg %p130
        %s243 = sand.u32 %s120, 1
        %s244 = scalar_lea.sflag [#allocation5], %s243
        %s245 = sand.u32 %s120, 1
        %s246 = smul.addr %s245, 64
        %s247 = scalar_lea.vmem [#allocation8], %s246
        %s248 = smul.u32 2, %s29
        %s249 = smul.u32 2, %s31
        %s250 = smul.u32 4, %s30
        %s251 = smul.u32 2, %s29
        %s252 = smul.u32 4, %s30
        %p253 = scmp.eq.s32.totalorder %s31, 0
        // Predicated region
        $region37: #{tpu_custom_call.1} parent=27 // pred_check
          %p254 = pneg %p253
        $region38: #{tpu_custom_call.1} parent=27 // pred_check_branch
          %256 = sbr.rel (%p254) target = $region40
        $region39: #{tpu_custom_call.1} parent=27 // pred_region
          %257 = vst [vmem:[#allocation2] sm:$0xff] 0.0
          %258 = vst [vmem:[#allocation2 + $0x8] sm:$0xff] 0.0
          %259 = vst [vmem:[#allocation2 + $0x10] sm:$0xff] 0.0
          %260 = vst [vmem:[#allocation2 + $0x18] sm:$0xff] 0.0
          %261 = vst [vmem:[#allocation2 + $0x20] sm:$0xff] 0.0
          %262 = vst [vmem:[#allocation2 + $0x28] sm:$0xff] 0.0
          %263 = vst [vmem:[#allocation2 + $0x30] sm:$0xff] 0.0
          %264 = vst [vmem:[#allocation2 + $0x38] sm:$0xff] 0.0
        $region40: #{tpu_custom_call.1} parent=27 // pred_fallthru
          _
        %v265 = vld [vmem:[#allocation2] sm:$0xff]
        %v266 = vld [vmem:[#allocation2 + $0x8] sm:$0xff]
        %v267 = vld [vmem:[#allocation2 + $0x10] sm:$0xff]
        %v268 = vld [vmem:[#allocation2 + $0x18] sm:$0xff]
        %v269 = vld [vmem:[#allocation2 + $0x20] sm:$0xff]
        %v270 = vld [vmem:[#allocation2 + $0x28] sm:$0xff]
        %v271 = vld [vmem:[#allocation2 + $0x30] sm:$0xff]
        %v272 = vld [vmem:[#allocation2 + $0x38] sm:$0xff]
        %v273 = vld [vmem:[%s213] sm:$0xff]
        %v274 = vld [vmem:[%s213 + $0x8] sm:$0xff]
        %v275 = vld [vmem:[%s222] sm:$0xff]
        %v276 = vld [vmem:[%s222 + $0x8] sm:$0xff]
        %v277 = vld [vmem:[%s222 + $0x10] sm:$0xff]
        %v278 = vld [vmem:[%s222 + $0x18] sm:$0xff]
        %v279 = vld [vmem:[%s222 + $0x20] sm:$0xff]
        %v280 = vld [vmem:[%s222 + $0x28] sm:$0xff]
        %v281 = vld [vmem:[%s222 + $0x30] sm:$0xff]
        %v282 = vld [vmem:[%s222 + $0x38] sm:$0xff]
        %vm283 = vcmask 130048
        %v285 = vsel %vm283, %v273, 0
        %v288 = vsel %vm283, %v274, 0
        %290 = vmatprep.subr.mxu0 %v276
        %291 = vmatpush1.msra.mxu0 %v275
        %292 = vmatprep.subr.mxu0 %v280
        %293 = vmatpush1.msra.mxu0 %v279
        %294 = vmatprep.subr.mxu0 0.0
        %295 = vmatpush1.msra.mxu0 0.0
        %296 = vmatprep.subr.mxu0 0.0
        %297 = vmatpush1.msra.mxu0 0.0
        %298 = vmatprep.subr.mxu0 0.0
        %299 = vmatpush1.msra.mxu0 0.0
        %300 = vmatprep.subr.mxu0 0.0
        %301 = vmatpush1.msra.mxu0 0.0
        %302 = vmatprep.subr.mxu0 0.0
        %303 = vmatpush1.msra.mxu0 0.0
        %304 = vmatprep.subr.mxu0 0.0
        %305 = vmatpush1.msra.mxu0 0.0
        %306 = vmatprep.subr.mxu0 0.0
        %307 = vmatpush1.msra.mxu0 0.0
        %308 = vmatprep.subr.mxu0 0.0
        %309 = vmatpush1.msra.mxu0 0.0
        %310 = vmatprep.subr.mxu0 0.0
        %311 = vmatpush1.msra.mxu0 0.0
        %312 = vmatprep.subr.mxu0 0.0
        %313 = vmatpush1.msra.mxu0 0.0
        %314 = vmatprep.subr.mxu0 0.0
        %315 = vmatpush1.msra.mxu0 0.0
        %316 = vmatprep.subr.mxu0 0.0
        %317 = vmatpush1.msra.mxu0 0.0
        %318 = vmatprep.subr.mxu0 0.0
        %319 = vmatpush1.msra.mxu0 0.0
        %320 = vmatprep.subr.mxu0 0.0
        %321 = vmatpush1.msra.mxu0 0.0
        %322 = vmatprep.subr.mxu0 0.0
        %323 = vmatpush1.msra.mxu0 0.0
        %324 = vmatprep.subr.mxu0 0.0
        %325 = vmatpush1.msra.mxu0 0.0
        %326 = vmatprep.subr.mxu0 0.0
        %327 = vmatpush1.msra.mxu0 0.0
        %328 = vmatprep.subr.mxu0 0.0
        %329 = vmatpush1.msra.mxu0 0.0
        %330 = vmatprep.subr.mxu0 0.0
        %331 = vmatpush1.msra.mxu0 0.0
        %332 = vmatprep.subr.mxu0 0.0
        %333 = vmatpush1.msra.mxu0 0.0
        %334 = vmatprep.subr.mxu0 0.0
        %335 = vmatpush1.msra.mxu0 0.0
        %336 = vmatprep.subr.mxu0 0.0
        %337 = vmatpush1.msra.mxu0 0.0
        %338 = vmatprep.subr.mxu0 0.0
        %339 = vmatpush1.msra.mxu0 0.0
        %340 = vmatprep.subr.mxu0 0.0
        %341 = vmatpush1.msra.mxu0 0.0
        %342 = vmatprep.subr.mxu0 0.0
        %343 = vmatpush1.msra.mxu0 0.0
        %344 = vmatprep.subr.mxu0 0.0
        %345 = vmatpush1.msra.mxu0 0.0
        %346 = vmatprep.subr.mxu0 0.0
        %347 = vmatpush1.msra.mxu0 0.0
        %348 = vmatprep.subr.mxu0 0.0
        %349 = vmatpush1.msra.mxu0 0.0
        %350 = vmatprep.subr.mxu0 0.0
        %351 = vmatpush1.msra.mxu0 0.0
        %352 = vmatprep.subr.mxu0 0.0
        %353 = vmatpush1.msra.mxu0 0.0
        %354 = vmatprep.mubr.f32.mxu0 0.0
        %355 = vmatmul.mubr.f32.gmra.mrb[0].mxu0 %v285
        %v356 = vpop.f32.mrb[0].mxu0
        %v357 = vadd.f32 0.0, %v356
        %v358 = vpop.f32.mrb[0].mxu0
        %v359 = vadd.f32 0.0, %v358
        %360 = vmatprep.mubr.f32.mxu0 0.0
        %361 = vmatmul.mubr.f32.gmra.mrb[0].mxu0 %v288
        %v362 = vpop.f32.mrb[0].mxu0
        %v363 = vadd.f32 0.0, %v362
        %v364 = vpop.f32.mrb[0].mxu0
        %v365 = vadd.f32 0.0, %v364
        %366 = vdwg.mxu0
        %367 = vmatprep.subr.mxu0 %v278
        %368 = vmatpush1.msra.mxu0 %v277
        %369 = vmatprep.subr.mxu0 %v282
        %370 = vmatpush1.msra.mxu0 %v281
        %371 = vmatprep.subr.mxu0 0.0
        %372 = vmatpush1.msra.mxu0 0.0
        %373 = vmatprep.subr.mxu0 0.0
        %374 = vmatpush1.msra.mxu0 0.0
        %375 = vmatprep.subr.mxu0 0.0
        %376 = vmatpush1.msra.mxu0 0.0
        %377 = vmatprep.subr.mxu0 0.0
        %378 = vmatpush1.msra.mxu0 0.0
        %379 = vmatprep.subr.mxu0 0.0
        %380 = vmatpush1.msra.mxu0 0.0
        %381 = vmatprep.subr.mxu0 0.0
        %382 = vmatpush1.msra.mxu0 0.0
        %383 = vmatprep.subr.mxu0 0.0
        %384 = vmatpush1.msra.mxu0 0.0
        %385 = vmatprep.subr.mxu0 0.0
        %386 = vmatpush1.msra.mxu0 0.0
        %387 = vmatprep.subr.mxu0 0.0
        %388 = vmatpush1.msra.mxu0 0.0
        %389 = vmatprep.subr.mxu0 0.0
        %390 = vmatpush1.msra.mxu0 0.0
        %391 = vmatprep.subr.mxu0 0.0
        %392 = vmatpush1.msra.mxu0 0.0
        %393 = vmatprep.subr.mxu0 0.0
        %394 = vmatpush1.msra.mxu0 0.0
        %395 = vmatprep.subr.mxu0 0.0
        %396 = vmatpush1.msra.mxu0 0.0
        %397 = vmatprep.subr.mxu0 0.0
        %398 = vmatpush1.msra.mxu0 0.0
        %399 = vmatprep.subr.mxu0 0.0
        %400 = vmatpush1.msra.mxu0 0.0
        %401 = vmatprep.subr.mxu0 0.0
        %402 = vmatpush1.msra.mxu0 0.0
        %403 = vmatprep.subr.mxu0 0.0
        %404 = vmatpush1.msra.mxu0 0.0
        %405 = vmatprep.subr.mxu0 0.0
        %406 = vmatpush1.msra.mxu0 0.0
        %407 = vmatprep.subr.mxu0 0.0
        %408 = vmatpush1.msra.mxu0 0.0
        %409 = vmatprep.subr.mxu0 0.0
        %410 = vmatpush1.msra.mxu0 0.0
        %411 = vmatprep.subr.mxu0 0.0
        %412 = vmatpush1.msra.mxu0 0.0
        %413 = vmatprep.subr.mxu0 0.0
        %414 = vmatpush1.msra.mxu0 0.0
        %415 = vmatprep.subr.mxu0 0.0
        %416 = vmatpush1.msra.mxu0 0.0
        %417 = vmatprep.subr.mxu0 0.0
        %418 = vmatpush1.msra.mxu0 0.0
        %419 = vmatprep.subr.mxu0 0.0
        %420 = vmatpush1.msra.mxu0 0.0
        %421 = vmatprep.subr.mxu0 0.0
        %422 = vmatpush1.msra.mxu0 0.0
        %423 = vmatprep.subr.mxu0 0.0
        %424 = vmatpush1.msra.mxu0 0.0
        %425 = vmatprep.subr.mxu0 0.0
        %426 = vmatpush1.msra.mxu0 0.0
        %427 = vmatprep.subr.mxu0 0.0
        %428 = vmatpush1.msra.mxu0 0.0
        %429 = vmatprep.subr.mxu0 0.0
        %430 = vmatpush1.msra.mxu0 0.0
        %431 = vmatprep.mubr.f32.mxu0 0.0
        %432 = vmatmul.mubr.f32.gmra.mrb[0].mxu0 %v285
        %v433 = vpop.f32.mrb[0].mxu0
        %v434 = vadd.f32 0.0, %v433
        %v435 = vpop.f32.mrb[0].mxu0
        %v436 = vadd.f32 0.0, %v435
        %437 = vmatprep.mubr.f32.mxu0 0.0
        %438 = vmatmul.mubr.f32.gmra.mrb[0].mxu0 %v288
        %v439 = vpop.f32.mrb[0].mxu0
        %v440 = vadd.f32 0.0, %v439
        %v441 = vpop.f32.mrb[0].mxu0
        %v442 = vadd.f32 0.0, %v441
        %443 = vdwg.mxu0
        %v444 = vadd.f32 %v265, %v357
        %v445 = vadd.f32 %v266, %v359
        %v446 = vadd.f32 %v267, %v434
        %v447 = vadd.f32 %v268, %v436
        %v448 = vadd.f32 %v269, %v363
        %v449 = vadd.f32 %v270, %v365
        %v450 = vadd.f32 %v271, %v440
        %v451 = vadd.f32 %v272, %v442
        %452 = vst [vmem:[#allocation2] sm:$0xff] %v444
        %453 = vst [vmem:[#allocation2 + $0x8] sm:$0xff] %v445
        %454 = vst [vmem:[#allocation2 + $0x10] sm:$0xff] %v446
        %455 = vst [vmem:[#allocation2 + $0x18] sm:$0xff] %v447
        %456 = vst [vmem:[#allocation2 + $0x20] sm:$0xff] %v448
        %457 = vst [vmem:[#allocation2 + $0x28] sm:$0xff] %v449
        %458 = vst [vmem:[#allocation2 + $0x30] sm:$0xff] %v450
        %459 = vst [vmem:[#allocation2 + $0x38] sm:$0xff] %v451
        // Predicated region
        $region41: #{tpu_custom_call.1} parent=27 // pred_check
          %p460 = pneg %p253
        $region42: #{tpu_custom_call.1} parent=27 // pred_check_branch
          %462 = sbr.rel (%p460) target = $region44
        $region43: #{tpu_custom_call.1} parent=27 // pred_region
          %v463 = vld [vmem:[#allocation2] sm:$0xff]
          %v464 = vld [vmem:[#allocation2 + $0x8] sm:$0xff]
          %v465 = vld [vmem:[#allocation2 + $0x10] sm:$0xff]
          %v466 = vld [vmem:[#allocation2 + $0x18] sm:$0xff]
          %v467 = vld [vmem:[#allocation2 + $0x20] sm:$0xff]
          %v468 = vld [vmem:[#allocation2 + $0x28] sm:$0xff]
          %v469 = vld [vmem:[#allocation2 + $0x30] sm:$0xff]
          %v470 = vld [vmem:[#allocation2 + $0x38] sm:$0xff]
          %471 = vst [vmem:[%s247] sm:$0xff] %v463
          %472 = vst [vmem:[%s247 + $0x8] sm:$0xff] %v464
          %473 = vst [vmem:[%s247 + $0x10] sm:$0xff] %v465
          %474 = vst [vmem:[%s247 + $0x18] sm:$0xff] %v466
          %475 = vst [vmem:[%s247 + $0x20] sm:$0xff] %v467
          %476 = vst [vmem:[%s247 + $0x28] sm:$0xff] %v468
          %477 = vst [vmem:[%s247 + $0x30] sm:$0xff] %v469
          %478 = vst [vmem:[%s247 + $0x38] sm:$0xff] %v470
        $region44: #{tpu_custom_call.1} parent=27 // pred_fallthru
          _
        %s479 = sand.u32 %s120, 1
        %s480 = scalar_lea.sflag [#allocation5], %s479
        %s481 = sand.u32 %s120, 1
        %s482 = smul.addr %s481, 64
        %s483 = scalar_lea.vmem [#allocation8], %s482
        // Predicated region
        $region45: #{tpu_custom_call.1} parent=27 // pred_check
          %p484 = pneg %p130
        $region46: #{tpu_custom_call.1} parent=27 // pred_check_branch
          %486 = sbr.rel (%p484) target = $region48
        $region47: #{tpu_custom_call.1} parent=27 // pred_region
          %s487 = smul.u32 2, %s29
          %s488 = smul.u32 4, %s30
          %s490 = ssub.s32 1024, 1024
          %491 = vsyncadd %s480, %s490
          %s492 = smul.addr %s487, 4
          %s493 = sadd.s32 %s488, %s492
          %s494 = smul.addr %s28, 8
          %s495 = sadd.s32 %s493, %s494
          %s496 = smul.addr %s495, 128
          %s497 = scalar_lea.hbm %s2, %s496
          %s498 = sshll.u32 %s483, 4
          %s499 = int_to_ptr.vmem [resolvable:$true] %s498
          %504 = dma.vmem_to_hbm [thread:$0]  %s499, 1024, %s497, %s480, 512, 512, 32
        $region48: #{tpu_custom_call.1} parent=27 // pred_fallthru
          _
      $region28: #{tpu_custom_call.1} parent=5 // pred_fallthru
        _
      %p505 = scmp.le.s32.totalorder 2, %s17
      // Predicated region
      $region49: #{tpu_custom_call.1} parent=5 // pred_check
        %p506 = pneg %p505
      $region50: #{tpu_custom_call.1} parent=5 // pred_check_branch
        %508 = sbr.rel (%p506) target = $region52
      $region51: #{tpu_custom_call.1} parent=5 // pred_region
        %s509 = ssub.s32 %s17, 2
        // Predicated region
        $region53: #{tpu_custom_call.1} parent=51 // pred_check
          %p510 = pneg %p136
        $region54: #{tpu_custom_call.1} parent=51 // pred_check_branch
          %512 = sbr.rel (%p510) target = $region56
        $region55: #{tpu_custom_call.1} parent=51 // pred_region
          %s513 = sand.u32 %s121, 1
          %s514 = scalar_lea.sflag [#allocation5], %s513
          %s515 = sand.u32 %s121, 1
          %s516 = smul.addr %s515, 64
          %s517 = scalar_lea.vmem [#allocation8], %s516
          %518 = dma.done %s514, 1024
        $region56: #{tpu_custom_call.1} parent=51 // pred_fallthru
          _
      $region52: #{tpu_custom_call.1} parent=5 // pred_fallthru
        _
    $region6: #{tpu_custom_call.1} parent=1 // loop_footer
      %s21 = sadd.s32 1, %s17
    $region7: #{tpu_custom_call.1} parent=1 // loop_footer_branch
      %16 = sbr.rel target = $region3
    $region8: #{tpu_custom_call.1} parent=1 // loop_exit
      _
    %519 = vsyncpa [#allocation4], 1
    %s520 = scalar_lea.sflag [#allocation4], 1
    %521 = vsyncpa %s520, 1
    %522 = vsyncpa [#allocation7], 1
    %s523 = scalar_lea.sflag [#allocation7], 1
    %524 = vsyncpa %s523, 1
    %525 = vsyncpa [#allocation5], 1
    %s526 = scalar_lea.sflag [#allocation5], 1
    %527 = vsyncpa %s526, 1

</llo_original>
